<compile_context>
chip_gen: v5e
topology: v5e:2x2
jax: 0.10.0
libtpu: 0.0.40
codegen_flags: <defaults>
</compile_context>

<pallas_src>
import functools

import jax
import jax.numpy as jnp
from jax.experimental import pallas as pl
from jax.experimental.pallas import tpu as pltpu

_HEAD_PAD = 128     # fused head weight padded to one full lane width for the MXU
_MAX_BLOCK_M = 512  # batch-tile cap for large batches


def _round_up(n, m):
    return ((n + m - 1) // m) * m


def _pick_block_m(B):
    """Adaptive batch tile: no 16x padding at tiny B, >=2 tiles when possible
    (v7x megacore), big tiles at large B to amortize grid-step overhead."""
    b = _round_up(B, 8)
    if b <= 8:
        return 8
    return min(_MAX_BLOCK_M, _round_up(pl.cdiv(b, 2), 8))


def _fnn_multitask_kernel(x_ref, w1_ref, b1_ref, w2_ref, b2_ref, wh_ref, bh_ref, out_ref):
    cd = w1_ref.dtype  # compute dtype (bf16 by default); accumulate in f32

    # fc1 + ReLU  (dropout == identity at inference). x cast in-kernel.
    h = jnp.dot(x_ref[...].astype(cd), w1_ref[...], preferred_element_type=jnp.float32)
    h = jnp.maximum(h + b1_ref[...], 0.0)          # f32 VPU epilogue (fast on v5e too)

    # fc2 + ReLU
    h = jnp.dot(h.astype(cd), w2_ref[...], preferred_element_type=jnp.float32)
    h = jnp.maximum(h + b2_ref[...], 0.0)

    # fused persona|sentiment head: 128-lane-wide MXU matmul, store only the
    # n_persona + n_sentiment (=8) real columns -> 16x smaller HBM writeback.
    y = jnp.dot(h.astype(cd), wh_ref[...], preferred_element_type=jnp.float32)
    y = y + bh_ref[...]
    out_ref[...] = y[:, : out_ref.shape[1]].astype(out_ref.dtype)


def prepare_params(params, compute_dtype=jnp.bfloat16):
    """One-time preprocessing (outside the hot path): fuse the two task heads
    into a single 128-lane-wide weight/bias and cast matmul weights to the MXU
    compute dtype. Biases stay f32."""
    n_p = params["wp"].shape[1]
    n_s = params["ws"].shape[1]
    assert n_p + n_s <= _HEAD_PAD
    D_o = params["w2"].shape[1]
    wh = jnp.zeros((D_o, _HEAD_PAD), jnp.float32)
    wh = wh.at[:, :n_p].set(params["wp"]).at[:, n_p:n_p + n_s].set(params["ws"])
    bh = jnp.zeros((1, _HEAD_PAD), jnp.float32)
    bh = bh.at[:, :n_p].set(params["bp"]).at[:, n_p:n_p + n_s].set(params["bs"])
    cd = compute_dtype
    return {
        "w1": params["w1"].astype(cd),
        "b1": params["b1"].astype(jnp.float32),
        "w2": params["w2"].astype(cd),
        "b2": params["b2"].astype(jnp.float32),
        "wh": wh.astype(cd),
        "bh": bh,
    }


@functools.partial(
    jax.jit,
    static_argnames=("block_m", "n_persona", "n_sentiment", "single_buffer_weights"),
)
def fnn_multitask_forward(x, prep, *, block_m=None, n_persona=5, n_sentiment=3,
                          single_buffer_weights=True):
    """x: (B, D_i) float32. prep: output of prepare_params().
    Returns (y_persona (B, n_persona), y_sentiment (B, n_sentiment)) in float32."""
    B, D_i = x.shape
    D_h = prep["w1"].shape[1]
    D_o = prep["w2"].shape[1]
    n_out = n_persona + n_sentiment

    if block_m is None:
        block_m = _pick_block_m(B)
    grid_m = pl.cdiv(B, block_m)
    B_pad = grid_m * block_m
    if B_pad != B:
        x = jnp.pad(x, ((0, B_pad - B), (0, 0)))

    # Resident operands (constant index_map): single-buffer to halve their VMEM.
    if single_buffer_weights:
        def _resident(shape):
            return pl.BlockSpec(shape, lambda i: (0, 0), pipeline_mode=pl.Buffered(1))
    else:
        def _resident(shape):
            return pl.BlockSpec(shape, lambda i: (0, 0))

    in_specs = [
        pl.BlockSpec((block_m, D_i), lambda i: (i, 0)),   # x, tiled over batch
        _resident((D_i, D_h)),                            # w1
        _resident((1, D_h)),                              # b1
        _resident((D_h, D_o)),                            # w2
        _resident((1, D_o)),                              # b2
        _resident((D_o, _HEAD_PAD)),                      # fused head weight
        _resident((1, _HEAD_PAD)),                        # fused head bias
    ]
    out_specs = pl.BlockSpec((block_m, n_out), lambda i: (i, 0))
    out_shape = jax.ShapeDtypeStruct((B_pad, n_out), jnp.float32)

    # VMEM budget: resident weights (+biases) x buffer count + double-buffered
    # x/out tiles + f32 intermediates, with headroom; clamped v7x-safe (<=64 MiB).
    w_itemsize = jnp.dtype(prep["w1"].dtype).itemsize
    n_buf = 1 if single_buffer_weights else 2
    resident = n_buf * ((D_i * D_h + D_h * D_o + D_o * _HEAD_PAD) * w_itemsize
                        + (D_h + D_o + _HEAD_PAD) * 4)
    per_step = (2 * (block_m * D_i * 4 + block_m * n_out * 4)
                + block_m * (D_h + D_o + _HEAD_PAD) * 4)
    vmem_limit = int(min(max(2 * (resident + per_step) + (4 << 20), 32 << 20), 64 << 20))

    out = pl.pallas_call(
        _fnn_multitask_kernel,
        grid=(grid_m,),
        in_specs=in_specs,
        out_specs=out_specs,
        out_shape=out_shape,
        compiler_params=pltpu.CompilerParams(
            dimension_semantics=("parallel",),
            vmem_limit_bytes=vmem_limit,
        ),
    )(x, prep["w1"], prep["b1"], prep["w2"], prep["b2"], prep["wh"], prep["bh"])

    y_persona = out[:B, :n_persona]
    y_sentiment = out[:B, n_persona:n_out]
    return y_persona, y_sentiment


def init_params(key, D_i, D_h, D_o, n_persona=5, n_sentiment=3):
    """Deterministic init mimicking nn.Linear's U(-1/sqrt(fan_in), 1/sqrt(fan_in)).
    Weights stored as (in, out) == PyTorch weight transposed."""
    def linear(k, fan_in, fan_out):
        kw, kb = jax.random.split(k)
        bound = 1.0 / jnp.sqrt(float(fan_in))
        w = jax.random.uniform(kw, (fan_in, fan_out), jnp.float32, -bound, bound)
        b = jax.random.uniform(kb, (1, fan_out), jnp.float32, -bound, bound)
        return w, b

    k1, k2, k3, k4 = jax.random.split(key, 4)
    w1, b1 = linear(k1, D_i, D_h)
    w2, b2 = linear(k2, D_h, D_o)
    wp, bp = linear(k3, D_o, n_persona)
    ws, bs = linear(k4, D_o, n_sentiment)
    return {"w1": w1, "b1": b1, "w2": w2, "b2": b2,
            "wp": wp, "bp": bp, "ws": ws, "bs": bs}


def reference_forward(x, p, compute_dtype=jnp.bfloat16):
    """Pure-JAX reference using the same mixed-precision recipe as the kernel."""
    cd = compute_dtype
    h = jnp.dot(x.astype(cd), p["w1"].astype(cd),
                preferred_element_type=jnp.float32) + p["b1"]
    h = jax.nn.relu(h)
    h = jnp.dot(h.astype(cd), p["w2"].astype(cd),
                preferred_element_type=jnp.float32) + p["b2"]
    h = jax.nn.relu(h)
    yp = jnp.dot(h.astype(cd), p["wp"].astype(cd),
                 preferred_element_type=jnp.float32) + p["bp"]
    ys = jnp.dot(h.astype(cd), p["ws"].astype(cd),
                 preferred_element_type=jnp.float32) + p["bs"]
    return yp, ys


_SINGLE_BUFFER_OK = True


def _run(x, prep, **kw):
    """Call the kernel, falling back to default double-buffering if this JAX
    version rejects pipeline_mode=pl.Buffered(1)."""
    global _SINGLE_BUFFER_OK
    if _SINGLE_BUFFER_OK:
        try:
            out = fnn_multitask_forward(x, prep, **kw)
            jax.block_until_ready(out)
            return out
        except Exception:
            _SINGLE_BUFFER_OK = False
    out = fnn_multitask_forward(x, prep, single_buffer_weights=False, **kw)
    jax.block_until_ready(out)
    return out


if __name__ == "__main__":
    # NOTE: multiples of 128 for D_i/D_h/D_o give much better lane/MXU
    # utilization; small demo dims are used here only to keep the test tiny.
    B, D_i, D_h, D_o = 8, 32, 64, 32

    key = jax.random.PRNGKey(0)
    kx, kp = jax.random.split(key)
    x = jax.random.normal(kx, (B, D_i), jnp.float32)
    params = init_params(kp, D_i, D_h, D_o)

    # bf16 MXU path (default).
    prep_bf16 = prepare_params(params, jnp.bfloat16)
    y_persona, y_sentiment = _run(x, prep_bf16)
    ref_p, ref_s = reference_forward(x, params, jnp.bfloat16)
    assert y_persona.shape == (B, 5) and y_sentiment.shape == (B, 3)
    assert jnp.allclose(y_persona, ref_p, atol=1e-2, rtol=1e-2)
    assert jnp.allclose(y_sentiment, ref_s, atol=1e-2, rtol=1e-2)

    # Exact f32 compute path against an f32 reference.
    prep_f32 = prepare_params(params, jnp.float32)
    yp32, ys32 = _run(x, prep_f32)
    rp32, rs32 = reference_forward(x, params, jnp.float32)
    assert jnp.allclose(yp32, rp32, atol=1e-5, rtol=1e-5)
    assert jnp.allclose(ys32, rs32, atol=1e-5, rtol=1e-5)

    # Ragged batch (exercises padding + a 2-step grid -> both v7x TensorCores).
    x2 = jax.random.normal(kx, (19, D_i), jnp.float32)
    yp2, ys2 = _run(x2, prep_f32)
    rp2, rs2 = reference_forward(x2, params, jnp.float32)
    assert yp2.shape == (19, 5) and ys2.shape == (19, 3)
    assert jnp.allclose(yp2, rp2, atol=1e-5, rtol=1e-5)
    assert jnp.allclose(ys2, rs2, atol=1e-5, rtol=1e-5)

    print("KERNEL_OK")
</pallas_src>

<mosaic_0001>
module attributes {stable_mosaic.version = 11 : i64} {
  func.func @_fnn_multitask_kernel(%arg0: i32, %arg1: memref<8x32xf32, #tpu.memory_space<vmem>>, %arg2: memref<32x64xbf16, #tpu.memory_space<vmem>>, %arg3: memref<1x64xf32, #tpu.memory_space<vmem>>, %arg4: memref<64x32xbf16, #tpu.memory_space<vmem>>, %arg5: memref<1x32xf32, #tpu.memory_space<vmem>>, %arg6: memref<32x128xbf16, #tpu.memory_space<vmem>>, %arg7: memref<1x128xf32, #tpu.memory_space<vmem>>, %arg8: memref<8x8xf32, #tpu.memory_space<vmem>>) attributes {dimension_semantics = [#tpu.dimension_semantics<parallel>], iteration_bounds = array<i64: 1>, scalar_prefetch = 0 : i64, scratch_operands = 0 : i64, tpu.core_type = #tpu.core_type<tc>, window_params = [{transform_indices = @transform_0, window_bounds = array<i64: 8, 32>}, {pipeline_mode = #tpu.pipeline_mode<synchronous>, transform_indices = @transform_1, window_bounds = array<i64: 32, 64>}, {pipeline_mode = #tpu.pipeline_mode<synchronous>, transform_indices = @transform_2, window_bounds = array<i64: 1, 64>}, {pipeline_mode = #tpu.pipeline_mode<synchronous>, transform_indices = @transform_3, window_bounds = array<i64: 64, 32>}, {pipeline_mode = #tpu.pipeline_mode<synchronous>, transform_indices = @transform_4, window_bounds = array<i64: 1, 32>}, {pipeline_mode = #tpu.pipeline_mode<synchronous>, transform_indices = @transform_5, window_bounds = array<i64: 32, 128>}, {pipeline_mode = #tpu.pipeline_mode<synchronous>, transform_indices = @transform_6, window_bounds = array<i64: 1, 128>}, {transform_indices = @transform_7, window_bounds = array<i64: 8, 8>}]} {
    %c0 = arith.constant 0 : index
    %c0_0 = arith.constant 0 : index
    %0 = vector.load %arg1[%c0, %c0_0] : memref<8x32xf32, #tpu.memory_space<vmem>>, vector<8x32xf32>
    %1 = arith.truncf %0 : vector<8x32xf32> to vector<8x32xbf16>
    %c0_1 = arith.constant 0 : index
    %c0_2 = arith.constant 0 : index
    %2 = vector.load %arg2[%c0_1, %c0_2] : memref<32x64xbf16, #tpu.memory_space<vmem>>, vector<32x64xbf16>
    %cst = arith.constant dense<0.000000e+00> : vector<8x64xf32>
    %3 = tpu.matmul %1, %2, %cst {dimension_numbers = #tpu.dot_dimension_numbers<[1], [0], [0], [1], [0, 0, 1, 1], [], []>} : vector<8x32xbf16>, vector<32x64xbf16>, vector<8x64xf32> -> vector<8x64xf32>
    %c0_3 = arith.constant 0 : index
    %c0_4 = arith.constant 0 : index
    %4 = vector.load %arg3[%c0_3, %c0_4] : memref<1x64xf32, #tpu.memory_space<vmem>>, vector<1x64xf32>
    %5 = vector.broadcast %4 : vector<1x64xf32> to vector<8x64xf32>
    %6 = arith.addf %3, %5 : vector<8x64xf32>
    %cst_5 = arith.constant 0.000000e+00 : f32
    %7 = vector.broadcast %cst_5 : f32 to vector<8x64xf32>
    %8 = arith.maximumf %6, %7 : vector<8x64xf32>
    %9 = arith.truncf %8 : vector<8x64xf32> to vector<8x64xbf16>
    %c0_6 = arith.constant 0 : index
    %c0_7 = arith.constant 0 : index
    %10 = vector.load %arg4[%c0_6, %c0_7] : memref<64x32xbf16, #tpu.memory_space<vmem>>, vector<64x32xbf16>
    %cst_8 = arith.constant dense<0.000000e+00> : vector<8x32xf32>
    %11 = tpu.matmul %9, %10, %cst_8 {dimension_numbers = #tpu.dot_dimension_numbers<[1], [0], [0], [1], [0, 0, 1, 1], [], []>} : vector<8x64xbf16>, vector<64x32xbf16>, vector<8x32xf32> -> vector<8x32xf32>
    %c0_9 = arith.constant 0 : index
    %c0_10 = arith.constant 0 : index
    %12 = vector.load %arg5[%c0_9, %c0_10] : memref<1x32xf32, #tpu.memory_space<vmem>>, vector<1x32xf32>
    %13 = vector.broadcast %12 : vector<1x32xf32> to vector<8x32xf32>
    %14 = arith.addf %11, %13 : vector<8x32xf32>
    %cst_11 = arith.constant 0.000000e+00 : f32
    %15 = vector.broadcast %cst_11 : f32 to vector<8x32xf32>
    %16 = arith.maximumf %14, %15 : vector<8x32xf32>
    %17 = arith.truncf %16 : vector<8x32xf32> to vector<8x32xbf16>
    %c0_12 = arith.constant 0 : index
    %c0_13 = arith.constant 0 : index
    %18 = vector.load %arg6[%c0_12, %c0_13] : memref<32x128xbf16, #tpu.memory_space<vmem>>, vector<32x128xbf16>
    %cst_14 = arith.constant dense<0.000000e+00> : vector<8x128xf32>
    %19 = tpu.matmul %17, %18, %cst_14 {dimension_numbers = #tpu.dot_dimension_numbers<[1], [0], [0], [1], [0, 0, 1, 1], [], []>} : vector<8x32xbf16>, vector<32x128xbf16>, vector<8x128xf32> -> vector<8x128xf32>
    %c0_15 = arith.constant 0 : index
    %c0_16 = arith.constant 0 : index
    %20 = vector.load %arg7[%c0_15, %c0_16] : memref<1x128xf32, #tpu.memory_space<vmem>>, vector<1x128xf32>
    %21 = vector.broadcast %20 : vector<1x128xf32> to vector<8x128xf32>
    %22 = arith.addf %19, %21 : vector<8x128xf32>
    %23 = vector.extract_strided_slice %22 {offsets = [0, 0], sizes = [8, 8], strides = [1, 1]} : vector<8x128xf32> to vector<8x8xf32>
    %c0_17 = arith.constant 0 : index
    %c0_18 = arith.constant 0 : index
    %24 = vector.load %arg8[%c0_17, %c0_18] : memref<8x8xf32, #tpu.memory_space<vmem>>, vector<8x8xf32>
    tpu.vector_store %arg8[%c0_17, %c0_18], %23 {strides = array<i32>} : memref<8x8xf32, #tpu.memory_space<vmem>>, vector<8x8xf32>,
    return
  }
  func.func @transform_0(%arg0: i32) -> (i32, i32) {
    %c0_i32 = arith.constant 0 : i32
    %c0_i32_0 = arith.constant 0 : i32
    return %arg0, %c0_i32 : i32, i32
  }
  func.func @transform_1(%arg0: i32) -> (i32, i32) {
    %c0_i32 = arith.constant 0 : i32
    %c0_i32_0 = arith.constant 0 : i32
    %c0_i32_1 = arith.constant 0 : i32
    return %c0_i32, %c0_i32_0 : i32, i32
  }
  func.func @transform_2(%arg0: i32) -> (i32, i32) {
    %c0_i32 = arith.constant 0 : i32
    %c0_i32_0 = arith.constant 0 : i32
    %c0_i32_1 = arith.constant 0 : i32
    return %c0_i32, %c0_i32_0 : i32, i32
  }
  func.func @transform_3(%arg0: i32) -> (i32, i32) {
    %c0_i32 = arith.constant 0 : i32
    %c0_i32_0 = arith.constant 0 : i32
    %c0_i32_1 = arith.constant 0 : i32
    return %c0_i32, %c0_i32_0 : i32, i32
  }
  func.func @transform_4(%arg0: i32) -> (i32, i32) {
    %c0_i32 = arith.constant 0 : i32
    %c0_i32_0 = arith.constant 0 : i32
    %c0_i32_1 = arith.constant 0 : i32
    return %c0_i32, %c0_i32_0 : i32, i32
  }
  func.func @transform_5(%arg0: i32) -> (i32, i32) {
    %c0_i32 = arith.constant 0 : i32
    %c0_i32_0 = arith.constant 0 : i32
    %c0_i32_1 = arith.constant 0 : i32
    return %c0_i32, %c0_i32_0 : i32, i32
  }
  func.func @transform_6(%arg0: i32) -> (i32, i32) {
    %c0_i32 = arith.constant 0 : i32
    %c0_i32_0 = arith.constant 0 : i32
    %c0_i32_1 = arith.constant 0 : i32
    return %c0_i32, %c0_i32_0 : i32, i32
  }
  func.func @transform_7(%arg0: i32) -> (i32, i32) {
    %c0_i32 = arith.constant 0 : i32
    %c0_i32_0 = arith.constant 0 : i32
    return %arg0, %c0_i32 : i32, i32
  }
}

module attributes {stable_mosaic.version = 11 : i64} {
  func.func @_fnn_multitask_kernel(%arg0: i32, %arg1: memref<8x32xf32, #tpu.memory_space<vmem>>, %arg2: memref<32x64xbf16, #tpu.memory_space<vmem>>, %arg3: memref<1x64xf32, #tpu.memory_space<vmem>>, %arg4: memref<64x32xbf16, #tpu.memory_space<vmem>>, %arg5: memref<1x32xf32, #tpu.memory_space<vmem>>, %arg6: memref<32x128xbf16, #tpu.memory_space<vmem>>, %arg7: memref<1x128xf32, #tpu.memory_space<vmem>>, %arg8: memref<8x8xf32, #tpu.memory_space<vmem>>) attributes {dimension_semantics = [#tpu.dimension_semantics<parallel>], iteration_bounds = array<i64: 1>, scalar_prefetch = 0 : i64, scratch_operands = 0 : i64, tpu.core_type = #tpu.core_type<tc>, window_params = [{transform_indices = @transform_0, window_bounds = array<i64: 8, 32>}, {pipeline_mode = #tpu.pipeline_mode<synchronous>, transform_indices = @transform_1, window_bounds = array<i64: 32, 64>}, {pipeline_mode = #tpu.pipeline_mode<synchronous>, transform_indices = @transform_2, window_bounds = array<i64: 1, 64>}, {pipeline_mode = #tpu.pipeline_mode<synchronous>, transform_indices = @transform_3, window_bounds = array<i64: 64, 32>}, {pipeline_mode = #tpu.pipeline_mode<synchronous>, transform_indices = @transform_4, window_bounds = array<i64: 1, 32>}, {pipeline_mode = #tpu.pipeline_mode<synchronous>, transform_indices = @transform_5, window_bounds = array<i64: 32, 128>}, {pipeline_mode = #tpu.pipeline_mode<synchronous>, transform_indices = @transform_6, window_bounds = array<i64: 1, 128>}, {transform_indices = @transform_7, window_bounds = array<i64: 8, 8>}]} {
    %c0 = arith.constant 0 : index
    %c0_0 = arith.constant 0 : index
    %0 = vector.load %arg1[%c0, %c0_0] : memref<8x32xf32, #tpu.memory_space<vmem>>, vector<8x32xf32>
    %1 = arith.truncf %0 : vector<8x32xf32> to vector<8x32xbf16>
    %c0_1 = arith.constant 0 : index
    %c0_2 = arith.constant 0 : index
    %2 = vector.load %arg2[%c0_1, %c0_2] : memref<32x64xbf16, #tpu.memory_space<vmem>>, vector<32x64xbf16>
    %cst = arith.constant dense<0.000000e+00> : vector<8x64xf32>
    %3 = tpu.matmul %1, %2, %cst {dimension_numbers = #tpu.dot_dimension_numbers<[1], [0], [0], [1], [0, 0, 1, 1], [], []>} : vector<8x32xbf16>, vector<32x64xbf16>, vector<8x64xf32> -> vector<8x64xf32>
    %c0_3 = arith.constant 0 : index
    %c0_4 = arith.constant 0 : index
    %4 = vector.load %arg3[%c0_3, %c0_4] : memref<1x64xf32, #tpu.memory_space<vmem>>, vector<1x64xf32>
    %5 = vector.broadcast %4 : vector<1x64xf32> to vector<8x64xf32>
    %6 = arith.addf %3, %5 : vector<8x64xf32>
    %cst_5 = arith.constant 0.000000e+00 : f32
    %7 = vector.broadcast %cst_5 : f32 to vector<8x64xf32>
    %8 = arith.maximumf %6, %7 : vector<8x64xf32>
    %9 = arith.truncf %8 : vector<8x64xf32> to vector<8x64xbf16>
    %c0_6 = arith.constant 0 : index
    %c0_7 = arith.constant 0 : index
    %10 = vector.load %arg4[%c0_6, %c0_7] : memref<64x32xbf16, #tpu.memory_space<vmem>>, vector<64x32xbf16>
    %cst_8 = arith.constant dense<0.000000e+00> : vector<8x32xf32>
    %11 = tpu.matmul %9, %10, %cst_8 {dimension_numbers = #tpu.dot_dimension_numbers<[1], [0], [0], [1], [0, 0, 1, 1], [], []>} : vector<8x64xbf16>, vector<64x32xbf16>, vector<8x32xf32> -> vector<8x32xf32>
    %c0_9 = arith.constant 0 : index
    %c0_10 = arith.constant 0 : index
    %12 = vector.load %arg5[%c0_9, %c0_10] : memref<1x32xf32, #tpu.memory_space<vmem>>, vector<1x32xf32>
    %13 = vector.broadcast %12 : vector<1x32xf32> to vector<8x32xf32>
    %14 = arith.addf %11, %13 : vector<8x32xf32>
    %cst_11 = arith.constant 0.000000e+00 : f32
    %15 = vector.broadcast %cst_11 : f32 to vector<8x32xf32>
    %16 = arith.maximumf %14, %15 : vector<8x32xf32>
    %17 = arith.truncf %16 : vector<8x32xf32> to vector<8x32xbf16>
    %c0_12 = arith.constant 0 : index
    %c0_13 = arith.constant 0 : index
    %18 = vector.load %arg6[%c0_12, %c0_13] : memref<32x128xbf16, #tpu.memory_space<vmem>>, vector<32x128xbf16>
    %cst_14 = arith.constant dense<0.000000e+00> : vector<8x128xf32>
    %19 = tpu.matmul %17, %18, %cst_14 {dimension_numbers = #tpu.dot_dimension_numbers<[1], [0], [0], [1], [0, 0, 1, 1], [], []>} : vector<8x32xbf16>, vector<32x128xbf16>, vector<8x128xf32> -> vector<8x128xf32>
    %c0_15 = arith.constant 0 : index
    %c0_16 = arith.constant 0 : index
    %20 = vector.load %arg7[%c0_15, %c0_16] : memref<1x128xf32, #tpu.memory_space<vmem>>, vector<1x128xf32>
    %21 = vector.broadcast %20 : vector<1x128xf32> to vector<8x128xf32>
    %22 = arith.addf %19, %21 : vector<8x128xf32>
    %23 = vector.extract_strided_slice %22 {offsets = [0, 0], sizes = [8, 8], strides = [1, 1]} : vector<8x128xf32> to vector<8x8xf32>
    %c0_17 = arith.constant 0 : index
    %c0_18 = arith.constant 0 : index
    %24 = vector.load %arg8[%c0_17, %c0_18] : memref<8x8xf32, #tpu.memory_space<vmem>>, vector<8x8xf32>
    tpu.vector_store %arg8[%c0_17, %c0_18], %23 {strides = array<i32>} : memref<8x8xf32, #tpu.memory_space<vmem>>, vector<8x8xf32>,
    return
  }
  func.func @transform_0(%arg0: i32) -> (i32, i32) {
    %c0_i32 = arith.constant 0 : i32
    %c0_i32_0 = arith.constant 0 : i32
    return %arg0, %c0_i32 : i32, i32
  }
  func.func @transform_1(%arg0: i32) -> (i32, i32) {
    %c0_i32 = arith.constant 0 : i32
    %c0_i32_0 = arith.constant 0 : i32
    %c0_i32_1 = arith.constant 0 : i32
    return %c0_i32, %c0_i32_0 : i32, i32
  }
  func.func @transform_2(%arg0: i32) -> (i32, i32) {
    %c0_i32 = arith.constant 0 : i32
    %c0_i32_0 = arith.constant 0 : i32
    %c0_i32_1 = arith.constant 0 : i32
    return %c0_i32, %c0_i32_0 : i32, i32
  }
  func.func @transform_3(%arg0: i32) -> (i32, i32) {
    %c0_i32 = arith.constant 0 : i32
    %c0_i32_0 = arith.constant 0 : i32
    %c0_i32_1 = arith.constant 0 : i32
    return %c0_i32, %c0_i32_0 : i32, i32
  }
  func.func @transform_4(%arg0: i32) -> (i32, i32) {
    %c0_i32 = arith.constant 0 : i32
    %c0_i32_0 = arith.constant 0 : i32
    %c0_i32_1 = arith.constant 0 : i32
    return %c0_i32, %c0_i32_0 : i32, i32
  }
  func.func @transform_5(%arg0: i32) -> (i32, i32) {
    %c0_i32 = arith.constant 0 : i32
    %c0_i32_0 = arith.constant 0 : i32
    %c0_i32_1 = arith.constant 0 : i32
    return %c0_i32, %c0_i32_0 : i32, i32
  }
  func.func @transform_6(%arg0: i32) -> (i32, i32) {
    %c0_i32 = arith.constant 0 : i32
    %c0_i32_0 = arith.constant 0 : i32
    %c0_i32_1 = arith.constant 0 : i32
    return %c0_i32, %c0_i32_0 : i32, i32
  }
  func.func @transform_7(%arg0: i32) -> (i32, i32) {
    %c0_i32 = arith.constant 0 : i32
    %c0_i32_0 = arith.constant 0 : i32
    return %arg0, %c0_i32 : i32, i32
  }
}

</mosaic_0001>

<llo_original>
// kernel: fnn_multitask_forward.1
$region0: #{fnn_multitask_forward.1}
  #allocation0 [shape = 'u32[]', space=smem, size = 0x4, offset = 0x4, fixed_abs, tag = 'smem constant byte address 0x4 - core index']
  #allocation1 [shape = 'u32[72,128]{1,0:T(1,128)}', space=vmem, size = 0x9000, scoped, tag = 'internal scratch']
  %s0 = inlined_call_operand.vmem [shape: f32[8,32], index: 0, kind: input, shape index: {}]
  %s1 = inlined_call_operand.vmem [shape: bf16[32,64], index: 1, kind: input, shape index: {}]
  %s2 = inlined_call_operand.vmem [shape: f32[1,64], index: 2, kind: input, shape index: {}]
  %s3 = inlined_call_operand.vmem [shape: bf16[64,32], index: 3, kind: input, shape index: {}]
  %s4 = inlined_call_operand.vmem [shape: f32[1,32], index: 4, kind: input, shape index: {}]
  %s5 = inlined_call_operand.vmem [shape: bf16[32,128], index: 5, kind: input, shape index: {}]
  %s6 = inlined_call_operand.vmem [shape: f32[1,128], index: 6, kind: input, shape index: {}]
  %s7 = inlined_call_operand.vmem [shape: f32[8,8], index: 7, kind: output, shape index: {}]
  %s8 = sld [smem:[#allocation0]]
  $region38: #{fnn_multitask_forward.1} parent=0
    _
  %s10 = ssub.s32 1, %s8
  %s11 = scalar_select 0, %s10, %s8
  // Predicated region
  $region2: #{fnn_multitask_forward.1} parent=0 // pred_check
    _
  $region3: #{fnn_multitask_forward.1} parent=0 // pred_check_branch
    %13 = sbr.rel (0) target = $region5
  $region4: #{fnn_multitask_forward.1} parent=0 // pred_region
    _
  $region5: #{fnn_multitask_forward.1} parent=0 // pred_fallthru
    _
  // Predicated region
  $region6: #{fnn_multitask_forward.1} parent=0 // pred_check
    _
  $region7: #{fnn_multitask_forward.1} parent=0 // pred_check_branch
    %15 = sbr.rel (0) target = $region9
  $region8: #{fnn_multitask_forward.1} parent=0 // pred_region
    _
  $region9: #{fnn_multitask_forward.1} parent=0 // pred_fallthru
    _
  // Predicated region
  $region10: #{fnn_multitask_forward.1} parent=0 // pred_check
    _
  $region11: #{fnn_multitask_forward.1} parent=0 // pred_check_branch
    %17 = sbr.rel (0) target = $region13
  $region12: #{fnn_multitask_forward.1} parent=0 // pred_region
    _
  $region13: #{fnn_multitask_forward.1} parent=0 // pred_fallthru
    _
  // Predicated region
  $region14: #{fnn_multitask_forward.1} parent=0 // pred_check
    _
  $region15: #{fnn_multitask_forward.1} parent=0 // pred_check_branch
    %19 = sbr.rel (0) target = $region17
  $region16: #{fnn_multitask_forward.1} parent=0 // pred_region
    _
  $region17: #{fnn_multitask_forward.1} parent=0 // pred_fallthru
    _
  // Predicated region
  $region18: #{fnn_multitask_forward.1} parent=0 // pred_check
    _
  $region19: #{fnn_multitask_forward.1} parent=0 // pred_check_branch
    %21 = sbr.rel (0) target = $region21
  $region20: #{fnn_multitask_forward.1} parent=0 // pred_region
    _
  $region21: #{fnn_multitask_forward.1} parent=0 // pred_fallthru
    _
  // Predicated region
  $region22: #{fnn_multitask_forward.1} parent=0 // pred_check
    _
  $region23: #{fnn_multitask_forward.1} parent=0 // pred_check_branch
    %23 = sbr.rel (0) target = $region25
  $region24: #{fnn_multitask_forward.1} parent=0 // pred_region
    _
  $region25: #{fnn_multitask_forward.1} parent=0 // pred_fallthru
    _
  // Predicated region
  $region26: #{fnn_multitask_forward.1} parent=0 // pred_check
    _
  $region27: #{fnn_multitask_forward.1} parent=0 // pred_check_branch
    %25 = sbr.rel (0) target = $region29
  $region28: #{fnn_multitask_forward.1} parent=0 // pred_region
    _
  $region29: #{fnn_multitask_forward.1} parent=0 // pred_fallthru
    _
  %v27 = vld [vmem:[%s0] sm:$0xff]
  %v28 = vpack.c.bf16 %v27, %v27
  %v29 = vld [vmem:[%s1] sm:$0xf]
  %v30 = vld [vmem:[%s1 + $0x4] sm:$0xf]
  %v31 = vld [vmem:[%s1 + $0x8] sm:$0xf]
  %v32 = vld [vmem:[%s1 + $0xc] sm:$0xf]
  %v33 = vld [vmem:[%s2] sm:$0x1]
  %v35 = vperm.slane %v33, 0
  %v41 = vunpack.c.l.b16 %v29
  %v42 = vunpack.c.l.b16 %v30
  %v43 = vunpack.c.l.b16 %v31
  %v44 = vunpack.c.l.b16 %v32
  %v45 = vpack.c.b16 %v42, %v41
  %v46 = vpack.c.b16 %v44, %v43
  %vm49 = vcmask 261120
  %v51 = vsel %vm49, %v28, 0
  %53 = vmatpush.bf16.msra.mxu0 0
  %54 = vmatpush.bf16.msra.mxu0 0
  %55 = vmatpush.bf16.msra.mxu0 0
  %56 = vmatpush.bf16.msra.mxu0 0
  %57 = vmatpush.bf16.msra.mxu0 0
  %58 = vmatpush.bf16.msra.mxu0 0
  %59 = vmatpush.bf16.msra.mxu0 %v46
  %60 = vmatpush.bf16.msra.mxu0 %v45
  %61 = vmatmul.bf16.gmra.mxu0 %v51
  %v62 = vpop.f32.mrf.mxu0
  %v63 = vadd.f32 %v35, %v62
  %v64 = vpop.f32.mrf.mxu0
  %65 = vdwg.mxu0
  %v66 = vmax.f32 %v63, 0.0
  %v67 = vpack.c.bf16 %v66, %v66
  %v68 = vld [vmem:[%s3] sm:$0xf]
  %v69 = vld [vmem:[%s3 + $0x4] sm:$0xf]
  %v70 = vld [vmem:[%s3 + $0x8] sm:$0xf]
  %v71 = vld [vmem:[%s3 + $0xc] sm:$0xf]
  %v72 = vld [vmem:[%s3 + $0x10] sm:$0xf]
  %v73 = vld [vmem:[%s3 + $0x14] sm:$0xf]
  %v74 = vld [vmem:[%s3 + $0x18] sm:$0xf]
  %v75 = vld [vmem:[%s3 + $0x1c] sm:$0xf]
  %v76 = vld [vmem:[%s4] sm:$0x1]
  %v78 = vperm.slane %v76, 0
  %v88 = vunpack.c.l.b16 %v68
  %v89 = vunpack.c.l.b16 %v69
  %v90 = vunpack.c.l.b16 %v70
  %v91 = vunpack.c.l.b16 %v71
  %v92 = vunpack.c.l.b16 %v72
  %v93 = vunpack.c.l.b16 %v73
  %v94 = vunpack.c.l.b16 %v74
  %v95 = vunpack.c.l.b16 %v75
  %v96 = vpack.c.b16 %v89, %v88
  %v97 = vpack.c.b16 %v91, %v90
  %v98 = vpack.c.b16 %v93, %v92
  %v99 = vpack.c.b16 %v95, %v94
  %vm104 = vcmask 523264
  %v106 = vsel %vm104, %v67, 0
  %108 = vmatpush.bf16.msra.mxu0 0
  %109 = vmatpush.bf16.msra.mxu0 0
  %110 = vmatpush.bf16.msra.mxu0 0
  %111 = vmatpush.bf16.msra.mxu0 0
  %112 = vmatpush.bf16.msra.mxu0 %v99
  %113 = vmatpush.bf16.msra.mxu0 %v98
  %114 = vmatpush.bf16.msra.mxu0 %v97
  %115 = vmatpush.bf16.msra.mxu0 %v96
  %116 = vmatmul.bf16.gmra.mxu0 %v106
  %v117 = vpop.f32.mrf.mxu0
  %v118 = vadd.f32 %v78, %v117
  %v119 = vpop.f32.mrf.mxu0
  %120 = vdwg.mxu0
  %v121 = vmax.f32 %v118, 0.0
  %v122 = vpack.c.bf16 %v121, %v121
  %v123 = vld [vmem:[%s5] sm:$0xf]
  %v124 = vld [vmem:[%s5 + $0x4] sm:$0xf]
  %v125 = vld [vmem:[%s5 + $0x8] sm:$0xf]
  %v126 = vld [vmem:[%s5 + $0xc] sm:$0xf]
  %v127 = vld [vmem:[%s6] sm:$0x1]
  %v129 = vperm.slane %v127, 0
  %v135 = vunpack.c.l.b16 %v123
  %v136 = vunpack.c.l.b16 %v124
  %v137 = vunpack.c.l.b16 %v125
  %v138 = vunpack.c.l.b16 %v126
  %v139 = vpack.c.b16 %v136, %v135
  %v140 = vpack.c.b16 %v138, %v137
  %v144 = vsel %vm49, %v122, 0
  %146 = vmatpush.bf16.msra.mxu0 0
  %147 = vmatpush.bf16.msra.mxu0 0
  %148 = vmatpush.bf16.msra.mxu0 0
  %149 = vmatpush.bf16.msra.mxu0 0
  %150 = vmatpush.bf16.msra.mxu0 0
  %151 = vmatpush.bf16.msra.mxu0 0
  %152 = vmatpush.bf16.msra.mxu0 %v140
  %153 = vmatpush.bf16.msra.mxu0 %v139
  %154 = vmatmul.bf16.gmra.mxu0 %v144
  %v155 = vpop.f32.mrf.mxu0
  %v156 = vadd.f32 %v129, %v155
  %v157 = vpop.f32.mrf.mxu0
  %158 = vdwg.mxu0
  %vm159 = vcmask 64512
  %160 = vst.msk [vmem:[%s7] sm:$0xff] %vm159, %v156
  // Predicated region
  $region30: #{fnn_multitask_forward.1} parent=0 // pred_check
    _
  $region31: #{fnn_multitask_forward.1} parent=0 // pred_check_branch
    %162 = sbr.rel (0) target = $region33
  $region32: #{fnn_multitask_forward.1} parent=0 // pred_region
    _
  $region33: #{fnn_multitask_forward.1} parent=0 // pred_fallthru
    _
  // Predicated region
  $region34: #{fnn_multitask_forward.1} parent=0 // pred_check
    _
  $region35: #{fnn_multitask_forward.1} parent=0 // pred_check_branch
    %164 = sbr.rel (0) target = $region37
  $region36: #{fnn_multitask_forward.1} parent=0 // pred_region
    _
  $region37: #{fnn_multitask_forward.1} parent=0 // pred_fallthru
    _

// kernel: fnn_multitask_forward.1
$region0: #{fnn_multitask_forward.1}
  #allocation0 [shape = 'u32[]', space=smem, size = 0x4, offset = 0x4, fixed_abs, tag = 'smem constant byte address 0x4 - core index']
  #allocation1 [shape = 'u32[72,128]{1,0:T(1,128)}', space=vmem, size = 0x9000, scoped, tag = 'internal scratch']
  %s0 = inlined_call_operand.vmem [shape: f32[8,32], index: 0, kind: input, shape index: {}]
  %s1 = inlined_call_operand.vmem [shape: bf16[32,64], index: 1, kind: input, shape index: {}]
  %s2 = inlined_call_operand.vmem [shape: f32[1,64], index: 2, kind: input, shape index: {}]
  %s3 = inlined_call_operand.vmem [shape: bf16[64,32], index: 3, kind: input, shape index: {}]
  %s4 = inlined_call_operand.vmem [shape: f32[1,32], index: 4, kind: input, shape index: {}]
  %s5 = inlined_call_operand.vmem [shape: bf16[32,128], index: 5, kind: input, shape index: {}]
  %s6 = inlined_call_operand.vmem [shape: f32[1,128], index: 6, kind: input, shape index: {}]
  %s7 = inlined_call_operand.vmem [shape: f32[8,8], index: 7, kind: output, shape index: {}]
  %s8 = sld [smem:[#allocation0]]
  $region38: #{fnn_multitask_forward.1} parent=0
    _
  %s10 = ssub.s32 1, %s8
  %s11 = scalar_select 0, %s10, %s8
  // Predicated region
  $region2: #{fnn_multitask_forward.1} parent=0 // pred_check
    _
  $region3: #{fnn_multitask_forward.1} parent=0 // pred_check_branch
    %13 = sbr.rel (0) target = $region5
  $region4: #{fnn_multitask_forward.1} parent=0 // pred_region
    _
  $region5: #{fnn_multitask_forward.1} parent=0 // pred_fallthru
    _
  // Predicated region
  $region6: #{fnn_multitask_forward.1} parent=0 // pred_check
    _
  $region7: #{fnn_multitask_forward.1} parent=0 // pred_check_branch
    %15 = sbr.rel (0) target = $region9
  $region8: #{fnn_multitask_forward.1} parent=0 // pred_region
    _
  $region9: #{fnn_multitask_forward.1} parent=0 // pred_fallthru
    _
  // Predicated region
  $region10: #{fnn_multitask_forward.1} parent=0 // pred_check
    _
  $region11: #{fnn_multitask_forward.1} parent=0 // pred_check_branch
    %17 = sbr.rel (0) target = $region13
  $region12: #{fnn_multitask_forward.1} parent=0 // pred_region
    _
  $region13: #{fnn_multitask_forward.1} parent=0 // pred_fallthru
    _
  // Predicated region
  $region14: #{fnn_multitask_forward.1} parent=0 // pred_check
    _
  $region15: #{fnn_multitask_forward.1} parent=0 // pred_check_branch
    %19 = sbr.rel (0) target = $region17
  $region16: #{fnn_multitask_forward.1} parent=0 // pred_region
    _
  $region17: #{fnn_multitask_forward.1} parent=0 // pred_fallthru
    _
  // Predicated region
  $region18: #{fnn_multitask_forward.1} parent=0 // pred_check
    _
  $region19: #{fnn_multitask_forward.1} parent=0 // pred_check_branch
    %21 = sbr.rel (0) target = $region21
  $region20: #{fnn_multitask_forward.1} parent=0 // pred_region
    _
  $region21: #{fnn_multitask_forward.1} parent=0 // pred_fallthru
    _
  // Predicated region
  $region22: #{fnn_multitask_forward.1} parent=0 // pred_check
    _
  $region23: #{fnn_multitask_forward.1} parent=0 // pred_check_branch
    %23 = sbr.rel (0) target = $region25
  $region24: #{fnn_multitask_forward.1} parent=0 // pred_region
    _
  $region25: #{fnn_multitask_forward.1} parent=0 // pred_fallthru
    _
  // Predicated region
  $region26: #{fnn_multitask_forward.1} parent=0 // pred_check
    _
  $region27: #{fnn_multitask_forward.1} parent=0 // pred_check_branch
    %25 = sbr.rel (0) target = $region29
  $region28: #{fnn_multitask_forward.1} parent=0 // pred_region
    _
  $region29: #{fnn_multitask_forward.1} parent=0 // pred_fallthru
    _
  %v27 = vld [vmem:[%s0] sm:$0xff]
  %v28 = vpack.c.bf16 %v27, %v27
  %v29 = vld [vmem:[%s1] sm:$0xf]
  %v30 = vld [vmem:[%s1 + $0x4] sm:$0xf]
  %v31 = vld [vmem:[%s1 + $0x8] sm:$0xf]
  %v32 = vld [vmem:[%s1 + $0xc] sm:$0xf]
  %v33 = vld [vmem:[%s2] sm:$0x1]
  %v35 = vperm.slane %v33, 0
  %v41 = vunpack.c.l.b16 %v29
  %v42 = vunpack.c.l.b16 %v30
  %v43 = vunpack.c.l.b16 %v31
  %v44 = vunpack.c.l.b16 %v32
  %v45 = vpack.c.b16 %v42, %v41
  %v46 = vpack.c.b16 %v44, %v43
  %vm49 = vcmask 261120
  %v51 = vsel %vm49, %v28, 0
  %53 = vmatpush.bf16.msra.mxu0 0
  %54 = vmatpush.bf16.msra.mxu0 0
  %55 = vmatpush.bf16.msra.mxu0 0
  %56 = vmatpush.bf16.msra.mxu0 0
  %57 = vmatpush.bf16.msra.mxu0 0
  %58 = vmatpush.bf16.msra.mxu0 0
  %59 = vmatpush.bf16.msra.mxu0 %v46
  %60 = vmatpush.bf16.msra.mxu0 %v45
  %61 = vmatmul.bf16.gmra.mxu0 %v51
  %v62 = vpop.f32.mrf.mxu0
  %v63 = vadd.f32 %v35, %v62
  %v64 = vpop.f32.mrf.mxu0
  %65 = vdwg.mxu0
  %v66 = vmax.f32 %v63, 0.0
  %v67 = vpack.c.bf16 %v66, %v66
  %v68 = vld [vmem:[%s3] sm:$0xf]
  %v69 = vld [vmem:[%s3 + $0x4] sm:$0xf]
  %v70 = vld [vmem:[%s3 + $0x8] sm:$0xf]
  %v71 = vld [vmem:[%s3 + $0xc] sm:$0xf]
  %v72 = vld [vmem:[%s3 + $0x10] sm:$0xf]
  %v73 = vld [vmem:[%s3 + $0x14] sm:$0xf]
  %v74 = vld [vmem:[%s3 + $0x18] sm:$0xf]
  %v75 = vld [vmem:[%s3 + $0x1c] sm:$0xf]
  %v76 = vld [vmem:[%s4] sm:$0x1]
  %v78 = vperm.slane %v76, 0
  %v88 = vunpack.c.l.b16 %v68
  %v89 = vunpack.c.l.b16 %v69
  %v90 = vunpack.c.l.b16 %v70
  %v91 = vunpack.c.l.b16 %v71
  %v92 = vunpack.c.l.b16 %v72
  %v93 = vunpack.c.l.b16 %v73
  %v94 = vunpack.c.l.b16 %v74
  %v95 = vunpack.c.l.b16 %v75
  %v96 = vpack.c.b16 %v89, %v88
  %v97 = vpack.c.b16 %v91, %v90
  %v98 = vpack.c.b16 %v93, %v92
  %v99 = vpack.c.b16 %v95, %v94
  %vm104 = vcmask 523264
  %v106 = vsel %vm104, %v67, 0
  %108 = vmatpush.bf16.msra.mxu0 0
  %109 = vmatpush.bf16.msra.mxu0 0
  %110 = vmatpush.bf16.msra.mxu0 0
  %111 = vmatpush.bf16.msra.mxu0 0
  %112 = vmatpush.bf16.msra.mxu0 %v99
  %113 = vmatpush.bf16.msra.mxu0 %v98
  %114 = vmatpush.bf16.msra.mxu0 %v97
  %115 = vmatpush.bf16.msra.mxu0 %v96
  %116 = vmatmul.bf16.gmra.mxu0 %v106
  %v117 = vpop.f32.mrf.mxu0
  %v118 = vadd.f32 %v78, %v117
  %v119 = vpop.f32.mrf.mxu0
  %120 = vdwg.mxu0
  %v121 = vmax.f32 %v118, 0.0
  %v122 = vpack.c.bf16 %v121, %v121
  %v123 = vld [vmem:[%s5] sm:$0xf]
  %v124 = vld [vmem:[%s5 + $0x4] sm:$0xf]
  %v125 = vld [vmem:[%s5 + $0x8] sm:$0xf]
  %v126 = vld [vmem:[%s5 + $0xc] sm:$0xf]
  %v127 = vld [vmem:[%s6] sm:$0x1]
  %v129 = vperm.slane %v127, 0
  %v135 = vunpack.c.l.b16 %v123
  %v136 = vunpack.c.l.b16 %v124
  %v137 = vunpack.c.l.b16 %v125
  %v138 = vunpack.c.l.b16 %v126
  %v139 = vpack.c.b16 %v136, %v135
  %v140 = vpack.c.b16 %v138, %v137
  %v144 = vsel %vm49, %v122, 0
  %146 = vmatpush.bf16.msra.mxu0 0
  %147 = vmatpush.bf16.msra.mxu0 0
  %148 = vmatpush.bf16.msra.mxu0 0
  %149 = vmatpush.bf16.msra.mxu0 0
  %150 = vmatpush.bf16.msra.mxu0 0
  %151 = vmatpush.bf16.msra.mxu0 0
  %152 = vmatpush.bf16.msra.mxu0 %v140
  %153 = vmatpush.bf16.msra.mxu0 %v139
  %154 = vmatmul.bf16.gmra.mxu0 %v144
  %v155 = vpop.f32.mrf.mxu0
  %v156 = vadd.f32 %v129, %v155
  %v157 = vpop.f32.mrf.mxu0
  %158 = vdwg.mxu0
  %vm159 = vcmask 64512
  %160 = vst.msk [vmem:[%s7] sm:$0xff] %vm159, %v156
  // Predicated region
  $region30: #{fnn_multitask_forward.1} parent=0 // pred_check
    _
  $region31: #{fnn_multitask_forward.1} parent=0 // pred_check_branch
    %162 = sbr.rel (0) target = $region33
  $region32: #{fnn_multitask_forward.1} parent=0 // pred_region
    _
  $region33: #{fnn_multitask_forward.1} parent=0 // pred_fallthru
    _
  // Predicated region
  $region34: #{fnn_multitask_forward.1} parent=0 // pred_check
    _
  $region35: #{fnn_multitask_forward.1} parent=0 // pred_check_branch
    %164 = sbr.rel (0) target = $region37
  $region36: #{fnn_multitask_forward.1} parent=0 // pred_region
    _
  $region37: #{fnn_multitask_forward.1} parent=0 // pred_fallthru
    _

</llo_original>
